<compile_context>
chip_gen: v7x
topology: tpu7x:2x2x1
jax: 0.10.0
libtpu: 0.0.40
codegen_flags: <defaults>
</compile_context>

<pallas_src>
import jax
import jax.numpy as jnp
from jax.experimental import pallas as pl
from jax.experimental.pallas import tpu as pltpu

HIDDEN1_UNITS = 300
HIDDEN2_UNITS = 600
STATE_SIZE = 29

_SUBLANE = 8
_LANE = 128
H1_P = 384          # round_up(300, 128)
H2_P = 640          # round_up(600, 128)
_MAX_TILE_B = 1024  # rows per grid step (h1/h2 intermediates ~4 MB at 1024)


def _round_up(n, m):
    return ((n + m - 1) // m) * m


def critic_kernel(x_ref, w1_ref, b1_ref, w2_ref, b2_ref, w3_ref, b3_ref, o_ref):
    # fc1 + relu (MXU).  K = 29 stays un-padded; Mosaic masks the lane padding
    # of the contraction, so no padded x needs to travel through HBM.
    h1 = jnp.dot(x_ref[...], w1_ref[...], preferred_element_type=jnp.float32)
    h1 = jnp.maximum(h1 + b1_ref[...], 0.0)
    # fc2 + relu (MXU).
    h2 = jnp.dot(h1, w2_ref[...], preferred_element_type=jnp.float32)
    h2 = jnp.maximum(h2 + b2_ref[...], 0.0)
    # fc3: single output column -> VPU multiply by the (1, 640) weight row,
    # VPU pre-reduce of the five 128-lane groups, then a single 128-lane XLU
    # reduction (keeps the vector-extended slots mostly free for the MXU).
    h2w = h2 * w3_ref[...]
    part = h2w[:, 0:_LANE]
    for g in range(1, H2_P // _LANE):
        part = part + h2w[:, g * _LANE:(g + 1) * _LANE]
    o_ref[...] = jnp.sum(part, axis=-1, keepdims=True) + b3_ref[...]


def prepare_params(params):
    """Pad weights/biases to lane-dense shapes ONCE (outside the hot path)."""
    w1, b1, w2, b2, w3, b3 = params

    def pad2(a, r, c):
        a = jnp.asarray(a, jnp.float32)
        return jnp.zeros((r, c), jnp.float32).at[: a.shape[0], : a.shape[1]].set(a)

    w1_p = pad2(w1, STATE_SIZE, H1_P)            # (29, 384): K stays un-padded
    b1_p = pad2(b1[None, :], 1, H1_P)            # (1, 384)
    w2_p = pad2(w2, H1_P, H2_P)                  # (384, 640)
    b2_p = pad2(b2[None, :], 1, H2_P)            # (1, 640)
    # fc3 weight stored as a (1, 640) row vector (its single column, transposed).
    w3_p = pad2(jnp.asarray(w3).reshape(-1)[None, :], 1, H2_P)
    b3_p = jnp.asarray(b3, jnp.float32).reshape(1, 1)
    return (w1_p, b1_p, w2_p, b2_p, w3_p, b3_p)


@jax.jit
def critic_forward(x, padded_params):
    """x: (B, STATE_SIZE) float32 -> (B, 1) float32."""
    w1_p, b1_p, w2_p, b2_p, w3_p, b3_p = padded_params
    B = x.shape[0]

    # Batch-tile policy:
    #  * multiple of 8 (sublane alignment),
    #  * at least two grid steps once B > 8 so the "parallel" axis can be
    #    sharded across both v7x TensorCores (one extra ~0.35 us step on
    #    single-TC v5e/v6e is negligible),
    #  * capped at 1024 rows per step.
    B8 = _round_up(B, _SUBLANE)
    if B8 <= _SUBLANE:
        tile_b = B8
    else:
        tile_b = min(_MAX_TILE_B, _round_up((B8 + 1) // 2, _SUBLANE))
    Bp = _round_up(B8, tile_b)
    grid = (Bp // tile_b,)

    # Only batch rows are padded (and only when needed); columns stay at 29.
    x_p = x.astype(jnp.float32)
    if Bp != B:
        x_p = jnp.pad(x_p, ((0, Bp - B), (0, 0)))

    flops = 2 * Bp * (STATE_SIZE * H1_P + H1_P * H2_P + H2_P)
    bytes_accessed = 4 * (Bp * STATE_SIZE + STATE_SIZE * H1_P + H1_P
                          + H1_P * H2_P + 2 * H2_P + 1 + Bp)

    out = pl.pallas_call(
        critic_kernel,
        out_shape=jax.ShapeDtypeStruct((Bp, 1), jnp.float32),
        grid=grid,
        in_specs=[
            # x: tiled over batch; last block dim equals the full (29) array dim.
            pl.BlockSpec((tile_b, STATE_SIZE), lambda i: (i, 0)),
            # Weights/biases: constant index_map -> DMA'd once, VMEM-resident.
            pl.BlockSpec((STATE_SIZE, H1_P), lambda i: (0, 0)),
            pl.BlockSpec((1, H1_P), lambda i: (0, 0)),
            pl.BlockSpec((H1_P, H2_P), lambda i: (0, 0)),
            pl.BlockSpec((1, H2_P), lambda i: (0, 0)),
            pl.BlockSpec((1, H2_P), lambda i: (0, 0)),
            pl.BlockSpec((1, 1), lambda i: (0, 0)),
        ],
        out_specs=pl.BlockSpec((tile_b, 1), lambda i: (i, 0)),
        compiler_params=pltpu.CompilerParams(
            dimension_semantics=("parallel",),
            # Raise v5e's 16 MiB default scoped-VMEM limit; 32 MiB is within
            # physical VMEM on every generation (v5e/v6e 128 MiB, v7x 64 MiB).
            vmem_limit_bytes=32 * 1024 * 1024),
        cost_estimate=pl.CostEstimate(
            flops=flops, transcendentals=0, bytes_accessed=bytes_accessed),
    )(x_p, w1_p, b1_p, w2_p, b2_p, w3_p, b3_p)

    return out[:B] if Bp != B else out


def init_params(key):
    """Deterministic init matching the PyTorch layer shapes (uniform +-1/sqrt(fan_in))."""
    k1, k2, k3, k4, k5, k6 = jax.random.split(key, 6)

    def unif(k, shape, fan_in):
        bound = 1.0 / jnp.sqrt(jnp.float32(fan_in))
        return jax.random.uniform(k, shape, jnp.float32, -bound, bound)

    w1 = unif(k1, (STATE_SIZE, HIDDEN1_UNITS), STATE_SIZE)
    b1 = unif(k2, (HIDDEN1_UNITS,), STATE_SIZE)
    w2 = unif(k3, (HIDDEN1_UNITS, HIDDEN2_UNITS), HIDDEN1_UNITS)
    b2 = unif(k4, (HIDDEN2_UNITS,), HIDDEN1_UNITS)
    w3 = unif(k5, (HIDDEN2_UNITS, 1), HIDDEN2_UNITS)
    b3 = unif(k6, (1,), HIDDEN2_UNITS)
    return (w1, b1, w2, b2, w3, b3)


def reference_forward(x, params):
    w1, b1, w2, b2, w3, b3 = params
    h1 = jnp.maximum(x @ w1 + b1, 0.0)
    h2 = jnp.maximum(h1 @ w2 + b2, 0.0)
    return h2 @ w3 + b3


if __name__ == "__main__":
    key = jax.random.PRNGKey(0)
    kx, kx2, kp = jax.random.split(key, 3)

    params = init_params(kp)
    # Pad weights once, outside the per-call hot path.
    padded_params = jax.tree_util.tree_map(
        jax.block_until_ready, prepare_params(params))

    # Small single-tile batch.
    x = jax.random.normal(kx, (8, STATE_SIZE), jnp.float32)
    value = jax.block_until_ready(critic_forward(x, padded_params))
    ref = reference_forward(x, params)
    assert value.shape == (8, 1), value.shape
    assert jnp.allclose(value, ref, atol=1e-4, rtol=1e-4), "mismatch vs reference (B=8)"

    # Multi-tile batch: exercises grid=2 (dual-TC parallel axis) and row padding.
    x2 = jax.random.normal(kx2, (40, STATE_SIZE), jnp.float32)
    value2 = jax.block_until_ready(critic_forward(x2, padded_params))
    ref2 = reference_forward(x2, params)
    assert value2.shape == (40, 1), value2.shape
    assert jnp.allclose(value2, ref2, atol=1e-4, rtol=1e-4), "mismatch vs reference (B=40)"

    print("KERNEL_OK")
</pallas_src>

<mosaic_0001>
module attributes {stable_mosaic.version = 11 : i64} {
  func.func @critic_kernel(%arg0: i32, %arg1: memref<8x29xf32, #tpu.memory_space<vmem>>, %arg2: memref<29x384xf32, #tpu.memory_space<vmem>>, %arg3: memref<1x384xf32, #tpu.memory_space<vmem>>, %arg4: memref<384x640xf32, #tpu.memory_space<vmem>>, %arg5: memref<1x640xf32, #tpu.memory_space<vmem>>, %arg6: memref<1x640xf32, #tpu.memory_space<vmem>>, %arg7: memref<1x1xf32, #tpu.memory_space<vmem>>, %arg8: memref<8x1xf32, #tpu.memory_space<vmem>>) attributes {dimension_semantics = [#tpu.dimension_semantics<parallel>], iteration_bounds = array<i64: 1>, scalar_prefetch = 0 : i64, scratch_operands = 0 : i64, tpu.core_type = #tpu.core_type<tc>, window_params = [{transform_indices = @transform_0, window_bounds = array<i64: 8, 29>}, {pipeline_mode = #tpu.pipeline_mode<synchronous>, transform_indices = @transform_1, window_bounds = array<i64: 29, 384>}, {pipeline_mode = #tpu.pipeline_mode<synchronous>, transform_indices = @transform_2, window_bounds = array<i64: 1, 384>}, {pipeline_mode = #tpu.pipeline_mode<synchronous>, transform_indices = @transform_3, window_bounds = array<i64: 384, 640>}, {pipeline_mode = #tpu.pipeline_mode<synchronous>, transform_indices = @transform_4, window_bounds = array<i64: 1, 640>}, {pipeline_mode = #tpu.pipeline_mode<synchronous>, transform_indices = @transform_5, window_bounds = array<i64: 1, 640>}, {pipeline_mode = #tpu.pipeline_mode<synchronous>, transform_indices = @transform_6, window_bounds = array<i64: 1, 1>}, {transform_indices = @transform_7, window_bounds = array<i64: 8, 1>}]} {
    %c0 = arith.constant 0 : index
    %c0_0 = arith.constant 0 : index
    %0 = vector.load %arg1[%c0, %c0_0] : memref<8x29xf32, #tpu.memory_space<vmem>>, vector<8x29xf32>
    %c0_1 = arith.constant 0 : index
    %c0_2 = arith.constant 0 : index
    %1 = vector.load %arg2[%c0_1, %c0_2] : memref<29x384xf32, #tpu.memory_space<vmem>>, vector<29x384xf32>
    %cst = arith.constant dense<0.000000e+00> : vector<8x384xf32>
    %2 = tpu.matmul %0, %1, %cst {dimension_numbers = #tpu.dot_dimension_numbers<[1], [0], [0], [1], [0, 0, 1, 1], [], []>} : vector<8x29xf32>, vector<29x384xf32>, vector<8x384xf32> -> vector<8x384xf32>
    %c0_3 = arith.constant 0 : index
    %c0_4 = arith.constant 0 : index
    %3 = vector.load %arg3[%c0_3, %c0_4] : memref<1x384xf32, #tpu.memory_space<vmem>>, vector<1x384xf32>
    %4 = vector.broadcast %3 : vector<1x384xf32> to vector<8x384xf32>
    %5 = arith.addf %2, %4 : vector<8x384xf32>
    %cst_5 = arith.constant 0.000000e+00 : f32
    %6 = vector.broadcast %cst_5 : f32 to vector<8x384xf32>
    %7 = arith.maximumf %5, %6 : vector<8x384xf32>
    %c0_6 = arith.constant 0 : index
    %c0_7 = arith.constant 0 : index
    %8 = vector.load %arg4[%c0_6, %c0_7] : memref<384x640xf32, #tpu.memory_space<vmem>>, vector<384x640xf32>
    %cst_8 = arith.constant dense<0.000000e+00> : vector<8x640xf32>
    %9 = tpu.matmul %7, %8, %cst_8 {dimension_numbers = #tpu.dot_dimension_numbers<[1], [0], [0], [1], [0, 0, 1, 1], [], []>} : vector<8x384xf32>, vector<384x640xf32>, vector<8x640xf32> -> vector<8x640xf32>
    %c0_9 = arith.constant 0 : index
    %c0_10 = arith.constant 0 : index
    %10 = vector.load %arg5[%c0_9, %c0_10] : memref<1x640xf32, #tpu.memory_space<vmem>>, vector<1x640xf32>
    %11 = vector.broadcast %10 : vector<1x640xf32> to vector<8x640xf32>
    %12 = arith.addf %9, %11 : vector<8x640xf32>
    %cst_11 = arith.constant 0.000000e+00 : f32
    %13 = vector.broadcast %cst_11 : f32 to vector<8x640xf32>
    %14 = arith.maximumf %12, %13 : vector<8x640xf32>
    %c0_12 = arith.constant 0 : index
    %c0_13 = arith.constant 0 : index
    %15 = vector.load %arg6[%c0_12, %c0_13] : memref<1x640xf32, #tpu.memory_space<vmem>>, vector<1x640xf32>
    %16 = vector.broadcast %15 : vector<1x640xf32> to vector<8x640xf32>
    %17 = arith.mulf %14, %16 : vector<8x640xf32>
    %18 = vector.extract_strided_slice %17 {offsets = [0, 0], sizes = [8, 128], strides = [1, 1]} : vector<8x640xf32> to vector<8x128xf32>
    %19 = vector.extract_strided_slice %17 {offsets = [0, 128], sizes = [8, 128], strides = [1, 1]} : vector<8x640xf32> to vector<8x128xf32>
    %20 = arith.addf %18, %19 : vector<8x128xf32>
    %21 = vector.extract_strided_slice %17 {offsets = [0, 256], sizes = [8, 128], strides = [1, 1]} : vector<8x640xf32> to vector<8x128xf32>
    %22 = arith.addf %20, %21 : vector<8x128xf32>
    %23 = vector.extract_strided_slice %17 {offsets = [0, 384], sizes = [8, 128], strides = [1, 1]} : vector<8x640xf32> to vector<8x128xf32>
    %24 = arith.addf %22, %23 : vector<8x128xf32>
    %25 = vector.extract_strided_slice %17 {offsets = [0, 512], sizes = [8, 128], strides = [1, 1]} : vector<8x640xf32> to vector<8x128xf32>
    %26 = arith.addf %24, %25 : vector<8x128xf32>
    %cst_14 = arith.constant dense<0.000000e+00> : vector<8xf32>
    %27 = vector.multi_reduction <add>, %26, %cst_14 [1] : vector<8x128xf32> to vector<8xf32>
    %28 = vector.shape_cast %27 : vector<8xf32> to vector<8x1xf32>
    %c0_15 = arith.constant 0 : index
    %c0_16 = arith.constant 0 : index
    %29 = vector.load %arg7[%c0_15, %c0_16] : memref<1x1xf32, #tpu.memory_space<vmem>>, vector<1x1xf32>
    %30 = vector.broadcast %29 : vector<1x1xf32> to vector<8x1xf32>
    %31 = arith.addf %28, %30 : vector<8x1xf32>
    %c0_17 = arith.constant 0 : index
    %c0_18 = arith.constant 0 : index
    %32 = vector.load %arg8[%c0_17, %c0_18] : memref<8x1xf32, #tpu.memory_space<vmem>>, vector<8x1xf32>
    tpu.vector_store %arg8[%c0_17, %c0_18], %31 {strides = array<i32>} : memref<8x1xf32, #tpu.memory_space<vmem>>, vector<8x1xf32>,
    return
  }
  func.func @transform_0(%arg0: i32) -> (i32, i32) {
    %c0_i32 = arith.constant 0 : i32
    %c0_i32_0 = arith.constant 0 : i32
    return %arg0, %c0_i32 : i32, i32
  }
  func.func @transform_1(%arg0: i32) -> (i32, i32) {
    %c0_i32 = arith.constant 0 : i32
    %c0_i32_0 = arith.constant 0 : i32
    %c0_i32_1 = arith.constant 0 : i32
    return %c0_i32, %c0_i32_0 : i32, i32
  }
  func.func @transform_2(%arg0: i32) -> (i32, i32) {
    %c0_i32 = arith.constant 0 : i32
    %c0_i32_0 = arith.constant 0 : i32
    %c0_i32_1 = arith.constant 0 : i32
    return %c0_i32, %c0_i32_0 : i32, i32
  }
  func.func @transform_3(%arg0: i32) -> (i32, i32) {
    %c0_i32 = arith.constant 0 : i32
    %c0_i32_0 = arith.constant 0 : i32
    %c0_i32_1 = arith.constant 0 : i32
    return %c0_i32, %c0_i32_0 : i32, i32
  }
  func.func @transform_4(%arg0: i32) -> (i32, i32) {
    %c0_i32 = arith.constant 0 : i32
    %c0_i32_0 = arith.constant 0 : i32
    %c0_i32_1 = arith.constant 0 : i32
    return %c0_i32, %c0_i32_0 : i32, i32
  }
  func.func @transform_5(%arg0: i32) -> (i32, i32) {
    %c0_i32 = arith.constant 0 : i32
    %c0_i32_0 = arith.constant 0 : i32
    %c0_i32_1 = arith.constant 0 : i32
    return %c0_i32, %c0_i32_0 : i32, i32
  }
  func.func @transform_6(%arg0: i32) -> (i32, i32) {
    %c0_i32 = arith.constant 0 : i32
    %c0_i32_0 = arith.constant 0 : i32
    %c0_i32_1 = arith.constant 0 : i32
    return %c0_i32, %c0_i32_0 : i32, i32
  }
  func.func @transform_7(%arg0: i32) -> (i32, i32) {
    %c0_i32 = arith.constant 0 : i32
    %c0_i32_0 = arith.constant 0 : i32
    return %arg0, %c0_i32 : i32, i32
  }
}

</mosaic_0001>

<llo_original>
// kernel: critic_forward.1
$region0: #{critic_forward.1}
  #allocation0 [shape = 'u32[]', space=smem, size = 0x4, offset = 0x4, fixed_abs, tag = 'smem constant byte address 0x4 - core index']
  #allocation1 [shape = 'u32[144,128]{1,0:T(1,128)}', space=vmem, size = 0x12000, scoped, tag = 'internal scratch']
  #allocation2 [shape = 'f32[1,1]{1,0:T(1,128)S(1)}', space=vmem, size = 0x200, scoped, tag = 'scoped memory for critic_forward.1']
  %s0 = inlined_call_operand.hbm [shape: f32[8,29], index: 0, kind: input, shape index: {}]
  %s1 = inlined_call_operand.hbm [shape: f32[29,384], index: 1, kind: input, shape index: {}]
  %s2 = inlined_call_operand.hbm [shape: f32[1,384], index: 2, kind: input, shape index: {}]
  %s3 = inlined_call_operand.hbm [shape: f32[384,640], index: 3, kind: input, shape index: {}]
  %s4 = inlined_call_operand.vmem [shape: f32[1,640], index: 4, kind: input, shape index: {}]
  %s5 = inlined_call_operand.vmem [shape: f32[1,640], index: 5, kind: input, shape index: {}]
  %s6 = inlined_call_operand.<no memory space> [shape: f32[1,1], index: 6, kind: input, shape index: {}]
  %s7 = inlined_call_operand.vmem [shape: f32[8,1], index: 7, kind: output, shape index: {}]
  %s8 = sld [smem:[#allocation0]]
  $region54: #{critic_forward.1} parent=0
    _
  %s10 = ssub.s32 1, %s8
  %s11 = scalar_select 0, %s10, %s8
  %v12 = vstv %s6
  %13 = vst [vmem:[#allocation2] sm:$0x1] %v12
  $region1: #{critic_forward.1} parent=0
    #allocation3 [shape = 'u8[4096]{0}', space=vmem, size = 0x1000, scoped, tag = 'input window, operand 0, single buffered']
    #allocation4 [shape = 's32[1]{0}', space=sflag, size = 0x4, scoped, tag = 'scoped memory for critic_forward.1']
    #allocation5 [shape = 'u8[49152]{0}', space=vmem, size = 0xc000, scoped, tag = 'input window, operand 1, single buffered']
    #allocation6 [shape = 's32[1]{0}', space=sflag, size = 0x4, scoped, tag = 'scoped memory for critic_forward.1']
    #allocation7 [shape = 'u8[1536]{0}', space=vmem, size = 0x800, scoped, tag = 'input window, operand 2, single buffered']
    #allocation8 [shape = 'u8[983040]{0}', space=vmem, size = 0xf0000, scoped, tag = 'input window, operand 3, single buffered']
    #allocation9 [shape = 's32[1]{0}', space=sflag, size = 0x4, scoped, tag = 'scoped memory for critic_forward.1']
    %14 = vsyncpa [#allocation4], 0
    %15 = vsyncpa [#allocation6], 0
    %16 = vsyncpa [#allocation9], 0
    // Predicated region
    $region2: #{critic_forward.1} parent=1 // pred_check
      _
    $region3: #{critic_forward.1} parent=1 // pred_check_branch
      %18 = sbr.rel (0) target = $region5
    $region4: #{critic_forward.1} parent=1 // pred_region
      %s20 = ssub.s32 128, 128
      %21 = vsyncadd [#allocation4], %s20
      %s23 = sshll.u32 [#allocation3], 4
      %s24 = int_to_ptr.vmem [resolvable:$true] %s23
      %26 = dma.hbm_to_vmem [thread:$0]  %s0, 128, %s24, [#allocation4]
    $region5: #{critic_forward.1} parent=1 // pred_fallthru
      _
    // Predicated region
    $region6: #{critic_forward.1} parent=1 // pred_check
      _
    $region7: #{critic_forward.1} parent=1 // pred_check_branch
      %28 = sbr.rel (0) target = $region9
    $region8: #{critic_forward.1} parent=1 // pred_region
      %s30 = ssub.s32 1536, 1536
      %31 = vsyncadd [#allocation6], %s30
      %s32 = sshll.u32 [#allocation5], 4
      %s33 = int_to_ptr.vmem [resolvable:$true] %s32
      %38 = dma.hbm_to_vmem [thread:$0]  %s1, 1536, %s33, [#allocation6], 384, 384, 24
    $region9: #{critic_forward.1} parent=1 // pred_fallthru
      _
    // Predicated region
    $region10: #{critic_forward.1} parent=1 // pred_check
      _
    $region11: #{critic_forward.1} parent=1 // pred_check_branch
      %40 = sbr.rel (0) target = $region13
    $region12: #{critic_forward.1} parent=1 // pred_region
      %s42 = ssub.s32 48, 48
      %43 = vsyncadd [#allocation6], %s42
      %s45 = sshll.u32 [#allocation7], 4
      %s46 = int_to_ptr.vmem [resolvable:$true] %s45
      %48 = dma.hbm_to_vmem [thread:$0]  %s2, 48, %s46, [#allocation6]
    $region13: #{critic_forward.1} parent=1 // pred_fallthru
      _
    // Predicated region
    $region14: #{critic_forward.1} parent=1 // pred_check
      _
    $region15: #{critic_forward.1} parent=1 // pred_check_branch
      %50 = sbr.rel (0) target = $region17
    $region16: #{critic_forward.1} parent=1 // pred_region
      %s52 = ssub.s32 30720, 30720
      %53 = vsyncadd [#allocation9], %s52
      %s54 = sshll.u32 [#allocation8], 4
      %s55 = int_to_ptr.vmem [resolvable:$true] %s54
      %60 = dma.hbm_to_vmem [thread:$0]  %s3, 30720, %s55, [#allocation9], 640, 640, 40
    $region17: #{critic_forward.1} parent=1 // pred_fallthru
      _
    // Predicated region
    $region18: #{critic_forward.1} parent=1 // pred_check
      _
    $region19: #{critic_forward.1} parent=1 // pred_check_branch
      %62 = sbr.rel (0) target = $region21
    $region20: #{critic_forward.1} parent=1 // pred_region
      _
    $region21: #{critic_forward.1} parent=1 // pred_fallthru
      _
    // Predicated region
    $region22: #{critic_forward.1} parent=1 // pred_check
      _
    $region23: #{critic_forward.1} parent=1 // pred_check_branch
      %64 = sbr.rel (0) target = $region25
    $region24: #{critic_forward.1} parent=1 // pred_region
      _
    $region25: #{critic_forward.1} parent=1 // pred_fallthru
      _
    // Predicated region
    $region26: #{critic_forward.1} parent=1 // pred_check
      _
    $region27: #{critic_forward.1} parent=1 // pred_check_branch
      %66 = sbr.rel (0) target = $region29
    $region28: #{critic_forward.1} parent=1 // pred_region
      _
    $region29: #{critic_forward.1} parent=1 // pred_fallthru
      _
    // Predicated region
    $region30: #{critic_forward.1} parent=1 // pred_check
      _
    $region31: #{critic_forward.1} parent=1 // pred_check_branch
      %68 = sbr.rel (0) target = $region33
    $region32: #{critic_forward.1} parent=1 // pred_region
      %69 = dma.done [#allocation4], 128
    $region33: #{critic_forward.1} parent=1 // pred_fallthru
      _
    // Predicated region
    $region34: #{critic_forward.1} parent=1 // pred_check
      _
    $region35: #{critic_forward.1} parent=1 // pred_check_branch
      %71 = sbr.rel (0) target = $region37
    $region36: #{critic_forward.1} parent=1 // pred_region
      %72 = dma.done [#allocation6], 1536
    $region37: #{critic_forward.1} parent=1 // pred_fallthru
      _
    // Predicated region
    $region38: #{critic_forward.1} parent=1 // pred_check
      _
    $region39: #{critic_forward.1} parent=1 // pred_check_branch
      %74 = sbr.rel (0) target = $region41
    $region40: #{critic_forward.1} parent=1 // pred_region
      %75 = dma.done [#allocation6], 48
    $region41: #{critic_forward.1} parent=1 // pred_fallthru
      _
    // Predicated region
    $region42: #{critic_forward.1} parent=1 // pred_check
      _
    $region43: #{critic_forward.1} parent=1 // pred_check_branch
      %77 = sbr.rel (0) target = $region45
    $region44: #{critic_forward.1} parent=1 // pred_region
      %78 = dma.done [#allocation9], 30720
    $region45: #{critic_forward.1} parent=1 // pred_fallthru
      _
    %v79 = vld [vmem:[#allocation3] sm:$0xff]
    %v80 = vld [vmem:[#allocation5] sm:$0xff]
    %v81 = vld [vmem:[#allocation5 + $0x8] sm:$0xff]
    %v82 = vld [vmem:[#allocation5 + $0x10] sm:$0xff]
    %v83 = vld [vmem:[#allocation5 + $0x18] sm:$0xff]
    %v84 = vld [vmem:[#allocation5 + $0x20] sm:$0xff]
    %v85 = vld [vmem:[#allocation5 + $0x28] sm:$0xff]
    %v86 = vld [vmem:[#allocation5 + $0x30] sm:$0xff]
    %v87 = vld [vmem:[#allocation5 + $0x38] sm:$0xff]
    %v88 = vld [vmem:[#allocation5 + $0x40] sm:$0xff]
    %v89 = vld [vmem:[#allocation5 + $0x48] sm:$0x1f]
    %v90 = vld [vmem:[#allocation5 + $0x50] sm:$0x1f]
    %v91 = vld [vmem:[#allocation5 + $0x58] sm:$0x1f]
    %v92 = vld [vmem:[#allocation7] sm:$0x7]
    %v94 = vlaneseq
    %v95 = vshrl.u32 %v94, 7
    %v96 = vsub.s32 0, %v95
    %v97 = vrot.slane %v92, %v96
    %v98 = vlaneseq
    %v99 = vshrl.u32 %v98, 7
    %v100 = vsub.s32 1, %v99
    %v101 = vrot.slane %v92, %v100
    %v102 = vlaneseq
    %v103 = vshrl.u32 %v102, 7
    %v104 = vsub.s32 2, %v103
    %v105 = vrot.slane %v92, %v104
    %vm109 = vcmask 236544
    %v111 = vsel %vm109, %v79, 0
    %vm113 = vcmask 1044480
    %v115 = vsel %vm113, %v89, 0
    %v118 = vsel %vm113, %v90, 0
    %v121 = vsel %vm113, %v91, 0
    %123 = vmatprep.subr.mxu0 %v81
    %124 = vmatpush1.msra.mxu0 %v80
    %125 = vmatprep.subr.mxu0 %v84
    %126 = vmatpush1.msra.mxu0 %v83
    %127 = vmatprep.subr.mxu0 %v87
    %128 = vmatpush1.msra.mxu0 %v86
    %129 = vmatprep.subr.mxu0 %v118
    %130 = vmatpush1.msra.mxu0 %v115
    %131 = vmatprep.subr.mxu0 0.0
    %132 = vmatpush1.msra.mxu0 0.0
    %133 = vmatprep.subr.mxu0 0.0
    %134 = vmatpush1.msra.mxu0 0.0
    %135 = vmatprep.subr.mxu0 0.0
    %136 = vmatpush1.msra.mxu0 0.0
    %137 = vmatprep.subr.mxu0 0.0
    %138 = vmatpush1.msra.mxu0 0.0
    %139 = vmatprep.subr.mxu0 0.0
    %140 = vmatpush1.msra.mxu0 0.0
    %141 = vmatprep.subr.mxu0 0.0
    %142 = vmatpush1.msra.mxu0 0.0
    %143 = vmatprep.subr.mxu0 0.0
    %144 = vmatpush1.msra.mxu0 0.0
    %145 = vmatprep.subr.mxu0 0.0
    %146 = vmatpush1.msra.mxu0 0.0
    %147 = vmatprep.subr.mxu0 0.0
    %148 = vmatpush1.msra.mxu0 0.0
    %149 = vmatprep.subr.mxu0 0.0
    %150 = vmatpush1.msra.mxu0 0.0
    %151 = vmatprep.subr.mxu0 0.0
    %152 = vmatpush1.msra.mxu0 0.0
    %153 = vmatprep.subr.mxu0 0.0
    %154 = vmatpush1.msra.mxu0 0.0
    %155 = vmatprep.subr.mxu0 0.0
    %156 = vmatpush1.msra.mxu0 0.0
    %157 = vmatprep.subr.mxu0 0.0
    %158 = vmatpush1.msra.mxu0 0.0
    %159 = vmatprep.subr.mxu0 0.0
    %160 = vmatpush1.msra.mxu0 0.0
    %161 = vmatprep.subr.mxu0 0.0
    %162 = vmatpush1.msra.mxu0 0.0
    %163 = vmatprep.subr.mxu0 0.0
    %164 = vmatpush1.msra.mxu0 0.0
    %165 = vmatprep.subr.mxu0 0.0
    %166 = vmatpush1.msra.mxu0 0.0
    %167 = vmatprep.subr.mxu0 0.0
    %168 = vmatpush1.msra.mxu0 0.0
    %169 = vmatprep.subr.mxu0 0.0
    %170 = vmatpush1.msra.mxu0 0.0
    %171 = vmatprep.subr.mxu0 0.0
    %172 = vmatpush1.msra.mxu0 0.0
    %173 = vmatprep.subr.mxu0 0.0
    %174 = vmatpush1.msra.mxu0 0.0
    %175 = vmatprep.subr.mxu0 0.0
    %176 = vmatpush1.msra.mxu0 0.0
    %177 = vmatprep.subr.mxu0 0.0
    %178 = vmatpush1.msra.mxu0 0.0
    %179 = vmatprep.subr.mxu0 0.0
    %180 = vmatpush1.msra.mxu0 0.0
    %181 = vmatprep.subr.mxu0 0.0
    %182 = vmatpush1.msra.mxu0 0.0
    %183 = vmatprep.subr.mxu0 0.0
    %184 = vmatpush1.msra.mxu0 0.0
    %185 = vmatprep.subr.mxu0 0.0
    %186 = vmatpush1.msra.mxu0 0.0
    %187 = vmatprep.mubr.f32.mxu0 0.0
    %188 = vmatmul.mubr.f32.gmra.mrb[0].mxu0 %v111
    %v189 = vpop.f32.mrb[0].mxu0
    %v190 = vadd.f32 %v97, %v189
    %v191 = vpop.f32.mrb[0].mxu0
    %v192 = vadd.f32 %v101, %v191
    %193 = vdwg.mxu0
    %194 = vmatprep.subr.mxu0 0.0
    %195 = vmatpush1.msra.mxu0 %v82
    %196 = vmatprep.subr.mxu0 0.0
    %197 = vmatpush1.msra.mxu0 %v85
    %198 = vmatprep.subr.mxu0 0.0
    %199 = vmatpush1.msra.mxu0 %v88
    %200 = vmatprep.subr.mxu0 0.0
    %201 = vmatpush1.msra.mxu0 %v121
    %202 = vmatprep.subr.mxu0 0.0
    %203 = vmatpush1.msra.mxu0 0.0
    %204 = vmatprep.subr.mxu0 0.0
    %205 = vmatpush1.msra.mxu0 0.0
    %206 = vmatprep.subr.mxu0 0.0
    %207 = vmatpush1.msra.mxu0 0.0
    %208 = vmatprep.subr.mxu0 0.0
    %209 = vmatpush1.msra.mxu0 0.0
    %210 = vmatprep.subr.mxu0 0.0
    %211 = vmatpush1.msra.mxu0 0.0
    %212 = vmatprep.subr.mxu0 0.0
    %213 = vmatpush1.msra.mxu0 0.0
    %214 = vmatprep.subr.mxu0 0.0
    %215 = vmatpush1.msra.mxu0 0.0
    %216 = vmatprep.subr.mxu0 0.0
    %217 = vmatpush1.msra.mxu0 0.0
    %218 = vmatprep.subr.mxu0 0.0
    %219 = vmatpush1.msra.mxu0 0.0
    %220 = vmatprep.subr.mxu0 0.0
    %221 = vmatpush1.msra.mxu0 0.0
    %222 = vmatprep.subr.mxu0 0.0
    %223 = vmatpush1.msra.mxu0 0.0
    %224 = vmatprep.subr.mxu0 0.0
    %225 = vmatpush1.msra.mxu0 0.0
    %226 = vmatprep.subr.mxu0 0.0
    %227 = vmatpush1.msra.mxu0 0.0
    %228 = vmatprep.subr.mxu0 0.0
    %229 = vmatpush1.msra.mxu0 0.0
    %230 = vmatprep.subr.mxu0 0.0
    %231 = vmatpush1.msra.mxu0 0.0
    %232 = vmatprep.subr.mxu0 0.0
    %233 = vmatpush1.msra.mxu0 0.0
    %234 = vmatprep.subr.mxu0 0.0
    %235 = vmatpush1.msra.mxu0 0.0
    %236 = vmatprep.subr.mxu0 0.0
    %237 = vmatpush1.msra.mxu0 0.0
    %238 = vmatprep.subr.mxu0 0.0
    %239 = vmatpush1.msra.mxu0 0.0
    %240 = vmatprep.subr.mxu0 0.0
    %241 = vmatpush1.msra.mxu0 0.0
    %242 = vmatprep.subr.mxu0 0.0
    %243 = vmatpush1.msra.mxu0 0.0
    %244 = vmatprep.subr.mxu0 0.0
    %245 = vmatpush1.msra.mxu0 0.0
    %246 = vmatprep.subr.mxu0 0.0
    %247 = vmatpush1.msra.mxu0 0.0
    %248 = vmatprep.subr.mxu0 0.0
    %249 = vmatpush1.msra.mxu0 0.0
    %250 = vmatprep.subr.mxu0 0.0
    %251 = vmatpush1.msra.mxu0 0.0
    %252 = vmatprep.subr.mxu0 0.0
    %253 = vmatpush1.msra.mxu0 0.0
    %254 = vmatprep.subr.mxu0 0.0
    %255 = vmatpush1.msra.mxu0 0.0
    %256 = vmatprep.subr.mxu0 0.0
    %257 = vmatpush1.msra.mxu0 0.0
    %258 = vmatprep.mubr.f32.mxu0 0.0
    %259 = vmatmul.mubr.f32.gmra.mrb[0].mxu0 %v111
    %v260 = vpop.f32.mrb[0].mxu0
    %v261 = vadd.f32 %v105, %v260
    %v262 = vpop.f32.mrb[0].mxu0
    %263 = vdwg.mxu0
    %v264 = vmax.f32 %v190, 0.0
    %v265 = vmax.f32 %v192, 0.0
    %v266 = vmax.f32 %v261, 0.0
    %v267 = vld [vmem:[#allocation8] sm:$0xff]
    %v268 = vld [vmem:[#allocation8 + $0x8] sm:$0xff]
    %v269 = vld [vmem:[#allocation8 + $0x10] sm:$0xff]
    %v270 = vld [vmem:[#allocation8 + $0x18] sm:$0xff]
    %v271 = vld [vmem:[#allocation8 + $0x20] sm:$0xff]
    %v272 = vld [vmem:[#allocation8 + $0x28] sm:$0xff]
    %v273 = vld [vmem:[#allocation8 + $0x30] sm:$0xff]
    %v274 = vld [vmem:[#allocation8 + $0x38] sm:$0xff]
    %v275 = vld [vmem:[#allocation8 + $0x40] sm:$0xff]
    %v276 = vld [vmem:[#allocation8 + $0x48] sm:$0xff]
    %v277 = vld [vmem:[#allocation8 + $0x50] sm:$0xff]
    %v278 = vld [vmem:[#allocation8 + $0x58] sm:$0xff]
    %v279 = vld [vmem:[#allocation8 + $0x60] sm:$0xff]
    %v280 = vld [vmem:[#allocation8 + $0x68] sm:$0xff]
    %v281 = vld [vmem:[#allocation8 + $0x70] sm:$0xff]
    %v282 = vld [vmem:[#allocation8 + $0x78] sm:$0xff]
    %v283 = vld [vmem:[#allocation8 + $0x80] sm:$0xff]
    %v284 = vld [vmem:[#allocation8 + $0x88] sm:$0xff]
    %v285 = vld [vmem:[#allocation8 + $0x90] sm:$0xff]
    %v286 = vld [vmem:[#allocation8 + $0x98] sm:$0xff]
    %v287 = vld [vmem:[#allocation8 + $0xa0] sm:$0xff]
    %v288 = vld [vmem:[#allocation8 + $0xa8] sm:$0xff]
    %v289 = vld [vmem:[#allocation8 + $0xb0] sm:$0xff]
    %v290 = vld [vmem:[#allocation8 + $0xb8] sm:$0xff]
    %v291 = vld [vmem:[#allocation8 + $0xc0] sm:$0xff]
    %v292 = vld [vmem:[#allocation8 + $0xc8] sm:$0xff]
    %v293 = vld [vmem:[#allocation8 + $0xd0] sm:$0xff]
    %v294 = vld [vmem:[#allocation8 + $0xd8] sm:$0xff]
    %v295 = vld [vmem:[#allocation8 + $0xe0] sm:$0xff]
    %v296 = vld [vmem:[#allocation8 + $0xe8] sm:$0xff]
    %v297 = vld [vmem:[#allocation8 + $0xf0] sm:$0xff]
    %v298 = vld [vmem:[#allocation8 + $0xf8] sm:$0xff]
    %v299 = vld [vmem:[#allocation8 + $0x100] sm:$0xff]
    %v300 = vld [vmem:[#allocation8 + $0x108] sm:$0xff]
    %v301 = vld [vmem:[#allocation8 + $0x110] sm:$0xff]
    %v302 = vld [vmem:[#allocation8 + $0x118] sm:$0xff]
    %v303 = vld [vmem:[#allocation8 + $0x120] sm:$0xff]
    %v304 = vld [vmem:[#allocation8 + $0x128] sm:$0xff]
    %v305 = vld [vmem:[#allocation8 + $0x130] sm:$0xff]
    %v306 = vld [vmem:[#allocation8 + $0x138] sm:$0xff]
    %v307 = vld [vmem:[#allocation8 + $0x140] sm:$0xff]
    %v308 = vld [vmem:[#allocation8 + $0x148] sm:$0xff]
    %v309 = vld [vmem:[#allocation8 + $0x150] sm:$0xff]
    %v310 = vld [vmem:[#allocation8 + $0x158] sm:$0xff]
    %v311 = vld [vmem:[#allocation8 + $0x160] sm:$0xff]
    %v312 = vld [vmem:[#allocation8 + $0x168] sm:$0xff]
    %v313 = vld [vmem:[#allocation8 + $0x170] sm:$0xff]
    %v314 = vld [vmem:[#allocation8 + $0x178] sm:$0xff]
    %v315 = vld [vmem:[#allocation8 + $0x180] sm:$0xff]
    %v316 = vld [vmem:[#allocation8 + $0x188] sm:$0xff]
    %v317 = vld [vmem:[#allocation8 + $0x190] sm:$0xff]
    %v318 = vld [vmem:[#allocation8 + $0x198] sm:$0xff]
    %v319 = vld [vmem:[#allocation8 + $0x1a0] sm:$0xff]
    %v320 = vld [vmem:[#allocation8 + $0x1a8] sm:$0xff]
    %v321 = vld [vmem:[#allocation8 + $0x1b0] sm:$0xff]
    %v322 = vld [vmem:[#allocation8 + $0x1b8] sm:$0xff]
    %v323 = vld [vmem:[#allocation8 + $0x1c0] sm:$0xff]
    %v324 = vld [vmem:[#allocation8 + $0x1c8] sm:$0xff]
    %v325 = vld [vmem:[#allocation8 + $0x1d0] sm:$0xff]
    %v326 = vld [vmem:[#allocation8 + $0x1d8] sm:$0xff]
    %v327 = vld [vmem:[#allocation8 + $0x1e0] sm:$0xff]
    %v328 = vld [vmem:[#allocation8 + $0x1e8] sm:$0xff]
    %v329 = vld [vmem:[#allocation8 + $0x1f0] sm:$0xff]
    %v330 = vld [vmem:[#allocation8 + $0x1f8] sm:$0xff]
    %v331 = vld [vmem:[#allocation8 + $0x200] sm:$0xff]
    %v332 = vld [vmem:[#allocation8 + $0x208] sm:$0xff]
    %v333 = vld [vmem:[#allocation8 + $0x210] sm:$0xff]
    %v334 = vld [vmem:[#allocation8 + $0x218] sm:$0xff]
    %v335 = vld [vmem:[#allocation8 + $0x220] sm:$0xff]
    %v336 = vld [vmem:[#allocation8 + $0x228] sm:$0xff]
    %v337 = vld [vmem:[#allocation8 + $0x230] sm:$0xff]
    %v338 = vld [vmem:[#allocation8 + $0x238] sm:$0xff]
    %v339 = vld [vmem:[#allocation8 + $0x240] sm:$0xff]
    %v340 = vld [vmem:[#allocation8 + $0x248] sm:$0xff]
    %v341 = vld [vmem:[#allocation8 + $0x250] sm:$0xff]
    %v342 = vld [vmem:[#allocation8 + $0x258] sm:$0xff]
    %v343 = vld [vmem:[#allocation8 + $0x260] sm:$0xff]
    %v344 = vld [vmem:[#allocation8 + $0x268] sm:$0xff]
    %v345 = vld [vmem:[#allocation8 + $0x270] sm:$0xff]
    %v346 = vld [vmem:[#allocation8 + $0x278] sm:$0xff]
    %v347 = vld [vmem:[#allocation8 + $0x280] sm:$0xff]
    %v348 = vld [vmem:[#allocation8 + $0x288] sm:$0xff]
    %v349 = vld [vmem:[#allocation8 + $0x290] sm:$0xff]
    %v350 = vld [vmem:[#allocation8 + $0x298] sm:$0xff]
    %v351 = vld [vmem:[#allocation8 + $0x2a0] sm:$0xff]
    %v352 = vld [vmem:[#allocation8 + $0x2a8] sm:$0xff]
    %v353 = vld [vmem:[#allocation8 + $0x2b0] sm:$0xff]
    %v354 = vld [vmem:[#allocation8 + $0x2b8] sm:$0xff]
    %v355 = vld [vmem:[#allocation8 + $0x2c0] sm:$0xff]
    %v356 = vld [vmem:[#allocation8 + $0x2c8] sm:$0xff]
    %v357 = vld [vmem:[#allocation8 + $0x2d0] sm:$0xff]
    %v358 = vld [vmem:[#allocation8 + $0x2d8] sm:$0xff]
    %v359 = vld [vmem:[#allocation8 + $0x2e0] sm:$0xff]
    %v360 = vld [vmem:[#allocation8 + $0x2e8] sm:$0xff]
    %v361 = vld [vmem:[#allocation8 + $0x2f0] sm:$0xff]
    %v362 = vld [vmem:[#allocation8 + $0x2f8] sm:$0xff]
    %v363 = vld [vmem:[#allocation8 + $0x300] sm:$0xff]
    %v364 = vld [vmem:[#allocation8 + $0x308] sm:$0xff]
    %v365 = vld [vmem:[#allocation8 + $0x310] sm:$0xff]
    %v366 = vld [vmem:[#allocation8 + $0x318] sm:$0xff]
    %v367 = vld [vmem:[#allocation8 + $0x320] sm:$0xff]
    %v368 = vld [vmem:[#allocation8 + $0x328] sm:$0xff]
    %v369 = vld [vmem:[#allocation8 + $0x330] sm:$0xff]
    %v370 = vld [vmem:[#allocation8 + $0x338] sm:$0xff]
    %v371 = vld [vmem:[#allocation8 + $0x340] sm:$0xff]
    %v372 = vld [vmem:[#allocation8 + $0x348] sm:$0xff]
    %v373 = vld [vmem:[#allocation8 + $0x350] sm:$0xff]
    %v374 = vld [vmem:[#allocation8 + $0x358] sm:$0xff]
    %v375 = vld [vmem:[#allocation8 + $0x360] sm:$0xff]
    %v376 = vld [vmem:[#allocation8 + $0x368] sm:$0xff]
    %v377 = vld [vmem:[#allocation8 + $0x370] sm:$0xff]
    %v378 = vld [vmem:[#allocation8 + $0x378] sm:$0xff]
    %v379 = vld [vmem:[#allocation8 + $0x380] sm:$0xff]
    %v380 = vld [vmem:[#allocation8 + $0x388] sm:$0xff]
    %v381 = vld [vmem:[#allocation8 + $0x390] sm:$0xff]
    %v382 = vld [vmem:[#allocation8 + $0x398] sm:$0xff]
    %v383 = vld [vmem:[#allocation8 + $0x3a0] sm:$0xff]
    %v384 = vld [vmem:[#allocation8 + $0x3a8] sm:$0xff]
    %v385 = vld [vmem:[#allocation8 + $0x3b0] sm:$0xff]
    %v386 = vld [vmem:[#allocation8 + $0x3b8] sm:$0xff]
    %v387 = vld [vmem:[#allocation8 + $0x3c0] sm:$0xff]
    %v388 = vld [vmem:[#allocation8 + $0x3c8] sm:$0xff]
    %v389 = vld [vmem:[#allocation8 + $0x3d0] sm:$0xff]
    %v390 = vld [vmem:[#allocation8 + $0x3d8] sm:$0xff]
    %v391 = vld [vmem:[#allocation8 + $0x3e0] sm:$0xff]
    %v392 = vld [vmem:[#allocation8 + $0x3e8] sm:$0xff]
    %v393 = vld [vmem:[#allocation8 + $0x3f0] sm:$0xff]
    %v394 = vld [vmem:[#allocation8 + $0x3f8] sm:$0xff]
    %v395 = vld [vmem:[#allocation8 + $0x400] sm:$0xff]
    %v396 = vld [vmem:[#allocation8 + $0x408] sm:$0xff]
    %v397 = vld [vmem:[#allocation8 + $0x410] sm:$0xff]
    %v398 = vld [vmem:[#allocation8 + $0x418] sm:$0xff]
    %v399 = vld [vmem:[#allocation8 + $0x420] sm:$0xff]
    %v400 = vld [vmem:[#allocation8 + $0x428] sm:$0xff]
    %v401 = vld [vmem:[#allocation8 + $0x430] sm:$0xff]
    %v402 = vld [vmem:[#allocation8 + $0x438] sm:$0xff]
    %v403 = vld [vmem:[#allocation8 + $0x440] sm:$0xff]
    %v404 = vld [vmem:[#allocation8 + $0x448] sm:$0xff]
    %v405 = vld [vmem:[#allocation8 + $0x450] sm:$0xff]
    %v406 = vld [vmem:[#allocation8 + $0x458] sm:$0xff]
    %v407 = vld [vmem:[#allocation8 + $0x460] sm:$0xff]
    %v408 = vld [vmem:[#allocation8 + $0x468] sm:$0xff]
    %v409 = vld [vmem:[#allocation8 + $0x470] sm:$0xff]
    %v410 = vld [vmem:[#allocation8 + $0x478] sm:$0xff]
    %v411 = vld [vmem:[#allocation8 + $0x480] sm:$0xff]
    %v412 = vld [vmem:[#allocation8 + $0x488] sm:$0xff]
    %v413 = vld [vmem:[#allocation8 + $0x490] sm:$0xff]
    %v414 = vld [vmem:[#allocation8 + $0x498] sm:$0xff]
    %v415 = vld [vmem:[#allocation8 + $0x4a0] sm:$0xff]
    %v416 = vld [vmem:[#allocation8 + $0x4a8] sm:$0xff]
    %v417 = vld [vmem:[#allocation8 + $0x4b0] sm:$0xff]
    %v418 = vld [vmem:[#allocation8 + $0x4b8] sm:$0xff]
    %v419 = vld [vmem:[#allocation8 + $0x4c0] sm:$0xff]
    %v420 = vld [vmem:[#allocation8 + $0x4c8] sm:$0xff]
    %v421 = vld [vmem:[#allocation8 + $0x4d0] sm:$0xff]
    %v422 = vld [vmem:[#allocation8 + $0x4d8] sm:$0xff]
    %v423 = vld [vmem:[#allocation8 + $0x4e0] sm:$0xff]
    %v424 = vld [vmem:[#allocation8 + $0x4e8] sm:$0xff]
    %v425 = vld [vmem:[#allocation8 + $0x4f0] sm:$0xff]
    %v426 = vld [vmem:[#allocation8 + $0x4f8] sm:$0xff]
    %v427 = vld [vmem:[#allocation8 + $0x500] sm:$0xff]
    %v428 = vld [vmem:[#allocation8 + $0x508] sm:$0xff]
    %v429 = vld [vmem:[#allocation8 + $0x510] sm:$0xff]
    %v430 = vld [vmem:[#allocation8 + $0x518] sm:$0xff]
    %v431 = vld [vmem:[#allocation8 + $0x520] sm:$0xff]
    %v432 = vld [vmem:[#allocation8 + $0x528] sm:$0xff]
    %v433 = vld [vmem:[#allocation8 + $0x530] sm:$0xff]
    %v434 = vld [vmem:[#allocation8 + $0x538] sm:$0xff]
    %v435 = vld [vmem:[#allocation8 + $0x540] sm:$0xff]
    %v436 = vld [vmem:[#allocation8 + $0x548] sm:$0xff]
    %v437 = vld [vmem:[#allocation8 + $0x550] sm:$0xff]
    %v438 = vld [vmem:[#allocation8 + $0x558] sm:$0xff]
    %v439 = vld [vmem:[#allocation8 + $0x560] sm:$0xff]
    %v440 = vld [vmem:[#allocation8 + $0x568] sm:$0xff]
    %v441 = vld [vmem:[#allocation8 + $0x570] sm:$0xff]
    %v442 = vld [vmem:[#allocation8 + $0x578] sm:$0xff]
    %v443 = vld [vmem:[#allocation8 + $0x580] sm:$0xff]
    %v444 = vld [vmem:[#allocation8 + $0x588] sm:$0xff]
    %v445 = vld [vmem:[#allocation8 + $0x590] sm:$0xff]
    %v446 = vld [vmem:[#allocation8 + $0x598] sm:$0xff]
    %v447 = vld [vmem:[#allocation8 + $0x5a0] sm:$0xff]
    %v448 = vld [vmem:[#allocation8 + $0x5a8] sm:$0xff]
    %v449 = vld [vmem:[#allocation8 + $0x5b0] sm:$0xff]
    %v450 = vld [vmem:[#allocation8 + $0x5b8] sm:$0xff]
    %v451 = vld [vmem:[#allocation8 + $0x5c0] sm:$0xff]
    %v452 = vld [vmem:[#allocation8 + $0x5c8] sm:$0xff]
    %v453 = vld [vmem:[#allocation8 + $0x5d0] sm:$0xff]
    %v454 = vld [vmem:[#allocation8 + $0x5d8] sm:$0xff]
    %v455 = vld [vmem:[#allocation8 + $0x5e0] sm:$0xff]
    %v456 = vld [vmem:[#allocation8 + $0x5e8] sm:$0xff]
    %v457 = vld [vmem:[#allocation8 + $0x5f0] sm:$0xff]
    %v458 = vld [vmem:[#allocation8 + $0x5f8] sm:$0xff]
    %v459 = vld [vmem:[#allocation8 + $0x600] sm:$0xff]
    %v460 = vld [vmem:[#allocation8 + $0x608] sm:$0xff]
    %v461 = vld [vmem:[#allocation8 + $0x610] sm:$0xff]
    %v462 = vld [vmem:[#allocation8 + $0x618] sm:$0xff]
    %v463 = vld [vmem:[#allocation8 + $0x620] sm:$0xff]
    %v464 = vld [vmem:[#allocation8 + $0x628] sm:$0xff]
    %v465 = vld [vmem:[#allocation8 + $0x630] sm:$0xff]
    %v466 = vld [vmem:[#allocation8 + $0x638] sm:$0xff]
    %v467 = vld [vmem:[#allocation8 + $0x640] sm:$0xff]
    %v468 = vld [vmem:[#allocation8 + $0x648] sm:$0xff]
    %v469 = vld [vmem:[#allocation8 + $0x650] sm:$0xff]
    %v470 = vld [vmem:[#allocation8 + $0x658] sm:$0xff]
    %v471 = vld [vmem:[#allocation8 + $0x660] sm:$0xff]
    %v472 = vld [vmem:[#allocation8 + $0x668] sm:$0xff]
    %v473 = vld [vmem:[#allocation8 + $0x670] sm:$0xff]
    %v474 = vld [vmem:[#allocation8 + $0x678] sm:$0xff]
    %v475 = vld [vmem:[#allocation8 + $0x680] sm:$0xff]
    %v476 = vld [vmem:[#allocation8 + $0x688] sm:$0xff]
    %v477 = vld [vmem:[#allocation8 + $0x690] sm:$0xff]
    %v478 = vld [vmem:[#allocation8 + $0x698] sm:$0xff]
    %v479 = vld [vmem:[#allocation8 + $0x6a0] sm:$0xff]
    %v480 = vld [vmem:[#allocation8 + $0x6a8] sm:$0xff]
    %v481 = vld [vmem:[#allocation8 + $0x6b0] sm:$0xff]
    %v482 = vld [vmem:[#allocation8 + $0x6b8] sm:$0xff]
    %v483 = vld [vmem:[#allocation8 + $0x6c0] sm:$0xff]
    %v484 = vld [vmem:[#allocation8 + $0x6c8] sm:$0xff]
    %v485 = vld [vmem:[#allocation8 + $0x6d0] sm:$0xff]
    %v486 = vld [vmem:[#allocation8 + $0x6d8] sm:$0xff]
    %v487 = vld [vmem:[#allocation8 + $0x6e0] sm:$0xff]
    %v488 = vld [vmem:[#allocation8 + $0x6e8] sm:$0xff]
    %v489 = vld [vmem:[#allocation8 + $0x6f0] sm:$0xff]
    %v490 = vld [vmem:[#allocation8 + $0x6f8] sm:$0xff]
    %v491 = vld [vmem:[#allocation8 + $0x700] sm:$0xff]
    %v492 = vld [vmem:[#allocation8 + $0x708] sm:$0xff]
    %v493 = vld [vmem:[#allocation8 + $0x710] sm:$0xff]
    %v494 = vld [vmem:[#allocation8 + $0x718] sm:$0xff]
    %v495 = vld [vmem:[#allocation8 + $0x720] sm:$0xff]
    %v496 = vld [vmem:[#allocation8 + $0x728] sm:$0xff]
    %v497 = vld [vmem:[#allocation8 + $0x730] sm:$0xff]
    %v498 = vld [vmem:[#allocation8 + $0x738] sm:$0xff]
    %v499 = vld [vmem:[#allocation8 + $0x740] sm:$0xff]
    %v500 = vld [vmem:[#allocation8 + $0x748] sm:$0xff]
    %v501 = vld [vmem:[#allocation8 + $0x750] sm:$0xff]
    %v502 = vld [vmem:[#allocation8 + $0x758] sm:$0xff]
    %v503 = vld [vmem:[#allocation8 + $0x760] sm:$0xff]
    %v504 = vld [vmem:[#allocation8 + $0x768] sm:$0xff]
    %v505 = vld [vmem:[#allocation8 + $0x770] sm:$0xff]
    %v506 = vld [vmem:[#allocation8 + $0x778] sm:$0xff]
    %v507 = vld [vmem:[%s4] sm:$0x1f]
    %v509 = vlaneseq
    %v510 = vshrl.u32 %v509, 7
    %v511 = vsub.s32 0, %v510
    %v512 = vrot.slane %v507, %v511
    %v513 = vlaneseq
    %v514 = vshrl.u32 %v513, 7
    %v515 = vsub.s32 1, %v514
    %v516 = vrot.slane %v507, %v515
    %v517 = vlaneseq
    %v518 = vshrl.u32 %v517, 7
    %v519 = vsub.s32 2, %v518
    %v520 = vrot.slane %v507, %v519
    %v521 = vlaneseq
    %v522 = vshrl.u32 %v521, 7
    %v523 = vsub.s32 3, %v522
    %v524 = vrot.slane %v507, %v523
    %v525 = vlaneseq
    %v526 = vshrl.u32 %v525, 7
    %v527 = vsub.s32 4, %v526
    %v528 = vrot.slane %v507, %v527
    %534 = vmatprep.subr.mxu0 %v268
    %535 = vmatpush1.msra.mxu0 %v267
    %536 = vmatprep.subr.mxu0 %v273
    %537 = vmatpush1.msra.mxu0 %v272
    %538 = vmatprep.subr.mxu0 %v278
    %539 = vmatpush1.msra.mxu0 %v277
    %540 = vmatprep.subr.mxu0 %v283
    %541 = vmatpush1.msra.mxu0 %v282
    %542 = vmatprep.subr.mxu0 %v288
    %543 = vmatpush1.msra.mxu0 %v287
    %544 = vmatprep.subr.mxu0 %v293
    %545 = vmatpush1.msra.mxu0 %v292
    %546 = vmatprep.subr.mxu0 %v298
    %547 = vmatpush1.msra.mxu0 %v297
    %548 = vmatprep.subr.mxu0 %v303
    %549 = vmatpush1.msra.mxu0 %v302
    %550 = vmatprep.subr.mxu0 %v308
    %551 = vmatpush1.msra.mxu0 %v307
    %552 = vmatprep.subr.mxu0 %v313
    %553 = vmatpush1.msra.mxu0 %v312
    %554 = vmatprep.subr.mxu0 %v318
    %555 = vmatpush1.msra.mxu0 %v317
    %556 = vmatprep.subr.mxu0 %v323
    %557 = vmatpush1.msra.mxu0 %v322
    %558 = vmatprep.subr.mxu0 %v328
    %559 = vmatpush1.msra.mxu0 %v327
    %560 = vmatprep.subr.mxu0 %v333
    %561 = vmatpush1.msra.mxu0 %v332
    %562 = vmatprep.subr.mxu0 %v338
    %563 = vmatpush1.msra.mxu0 %v337
    %564 = vmatprep.subr.mxu0 %v343
    %565 = vmatpush1.msra.mxu0 %v342
    %566 = vmatprep.subr.mxu0 %v348
    %567 = vmatpush1.msra.mxu0 %v347
    %568 = vmatprep.subr.mxu0 %v353
    %569 = vmatpush1.msra.mxu0 %v352
    %570 = vmatprep.subr.mxu0 %v358
    %571 = vmatpush1.msra.mxu0 %v357
    %572 = vmatprep.subr.mxu0 %v363
    %573 = vmatpush1.msra.mxu0 %v362
    %574 = vmatprep.subr.mxu0 %v368
    %575 = vmatpush1.msra.mxu0 %v367
    %576 = vmatprep.subr.mxu0 %v373
    %577 = vmatpush1.msra.mxu0 %v372
    %578 = vmatprep.subr.mxu0 %v378
    %579 = vmatpush1.msra.mxu0 %v377
    %580 = vmatprep.subr.mxu0 %v383
    %581 = vmatpush1.msra.mxu0 %v382
    %582 = vmatprep.subr.mxu0 %v388
    %583 = vmatpush1.msra.mxu0 %v387
    %584 = vmatprep.subr.mxu0 %v393
    %585 = vmatpush1.msra.mxu0 %v392
    %586 = vmatprep.subr.mxu0 %v398
    %587 = vmatpush1.msra.mxu0 %v397
    %588 = vmatprep.subr.mxu0 %v403
    %589 = vmatpush1.msra.mxu0 %v402
    %590 = vmatprep.subr.mxu0 %v408
    %591 = vmatpush1.msra.mxu0 %v407
    %592 = vmatprep.subr.mxu0 %v413
    %593 = vmatpush1.msra.mxu0 %v412
    %594 = vmatprep.subr.mxu0 %v418
    %595 = vmatpush1.msra.mxu0 %v417
    %596 = vmatprep.subr.mxu0 %v423
    %597 = vmatpush1.msra.mxu0 %v422
    %598 = vmatprep.mubr.f32.mxu0 %v265
    %599 = vmatmul.mubr.f32.gmra.mrb[0].mxu0 %v264
    %v600 = vpop.f32.mrb[0].mxu0
    %v601 = vadd.f32 %v512, %v600
    %v602 = vpop.f32.mrb[0].mxu0
    %v603 = vadd.f32 %v516, %v602
    %604 = vdwg.mxu0
    %605 = vmatprep.subr.mxu0 %v428
    %606 = vmatpush1.msra.mxu0 %v427
    %607 = vmatprep.subr.mxu0 %v433
    %608 = vmatpush1.msra.mxu0 %v432
    %609 = vmatprep.subr.mxu0 %v438
    %610 = vmatpush1.msra.mxu0 %v437
    %611 = vmatprep.subr.mxu0 %v443
    %612 = vmatpush1.msra.mxu0 %v442
    %613 = vmatprep.subr.mxu0 %v448
    %614 = vmatpush1.msra.mxu0 %v447
    %615 = vmatprep.subr.mxu0 %v453
    %616 = vmatpush1.msra.mxu0 %v452
    %617 = vmatprep.subr.mxu0 %v458
    %618 = vmatpush1.msra.mxu0 %v457
    %619 = vmatprep.subr.mxu0 %v463
    %620 = vmatpush1.msra.mxu0 %v462
    %621 = vmatprep.subr.mxu0 %v468
    %622 = vmatpush1.msra.mxu0 %v467
    %623 = vmatprep.subr.mxu0 %v473
    %624 = vmatpush1.msra.mxu0 %v472
    %625 = vmatprep.subr.mxu0 %v478
    %626 = vmatpush1.msra.mxu0 %v477
    %627 = vmatprep.subr.mxu0 %v483
    %628 = vmatpush1.msra.mxu0 %v482
    %629 = vmatprep.subr.mxu0 %v488
    %630 = vmatpush1.msra.mxu0 %v487
    %631 = vmatprep.subr.mxu0 %v493
    %632 = vmatpush1.msra.mxu0 %v492
    %633 = vmatprep.subr.mxu0 %v498
    %634 = vmatpush1.msra.mxu0 %v497
    %635 = vmatprep.subr.mxu0 %v503
    %636 = vmatpush1.msra.mxu0 %v502
    %637 = vmatprep.subr.mxu0 0.0
    %638 = vmatpush1.msra.mxu0 0.0
    %639 = vmatprep.subr.mxu0 0.0
    %640 = vmatpush1.msra.mxu0 0.0
    %641 = vmatprep.subr.mxu0 0.0
    %642 = vmatpush1.msra.mxu0 0.0
    %643 = vmatprep.subr.mxu0 0.0
    %644 = vmatpush1.msra.mxu0 0.0
    %645 = vmatprep.subr.mxu0 0.0
    %646 = vmatpush1.msra.mxu0 0.0
    %647 = vmatprep.subr.mxu0 0.0
    %648 = vmatpush1.msra.mxu0 0.0
    %649 = vmatprep.subr.mxu0 0.0
    %650 = vmatpush1.msra.mxu0 0.0
    %651 = vmatprep.subr.mxu0 0.0
    %652 = vmatpush1.msra.mxu0 0.0
    %653 = vmatprep.subr.mxu0 0.0
    %654 = vmatpush1.msra.mxu0 0.0
    %655 = vmatprep.subr.mxu0 0.0
    %656 = vmatpush1.msra.mxu0 0.0
    %657 = vmatprep.subr.mxu0 0.0
    %658 = vmatpush1.msra.mxu0 0.0
    %659 = vmatprep.subr.mxu0 0.0
    %660 = vmatpush1.msra.mxu0 0.0
    %661 = vmatprep.subr.mxu0 0.0
    %662 = vmatpush1.msra.mxu0 0.0
    %663 = vmatprep.subr.mxu0 0.0
    %664 = vmatpush1.msra.mxu0 0.0
    %665 = vmatprep.subr.mxu0 0.0
    %666 = vmatpush1.msra.mxu0 0.0
    %667 = vmatprep.subr.mxu0 0.0
    %668 = vmatpush1.msra.mxu0 0.0
    %669 = vmatprep.mubr.f32.mxu0 0.0
    %670 = vmatmul.mubr.f32.gmra.mrb[0].mxu0 %v266
    %v671 = vpop.f32.mrb[0].mxu0
    %v672 = vadd.f32 %v601, %v671
    %v673 = vpop.f32.mrb[0].mxu0
    %v674 = vadd.f32 %v603, %v673
    %675 = vdwg.mxu0
    %676 = vmatprep.subr.mxu0 %v270
    %677 = vmatpush1.msra.mxu0 %v269
    %678 = vmatprep.subr.mxu0 %v275
    %679 = vmatpush1.msra.mxu0 %v274
    %680 = vmatprep.subr.mxu0 %v280
    %681 = vmatpush1.msra.mxu0 %v279
    %682 = vmatprep.subr.mxu0 %v285
    %683 = vmatpush1.msra.mxu0 %v284
    %684 = vmatprep.subr.mxu0 %v290
    %685 = vmatpush1.msra.mxu0 %v289
    %686 = vmatprep.subr.mxu0 %v295
    %687 = vmatpush1.msra.mxu0 %v294
    %688 = vmatprep.subr.mxu0 %v300
    %689 = vmatpush1.msra.mxu0 %v299
    %690 = vmatprep.subr.mxu0 %v305
    %691 = vmatpush1.msra.mxu0 %v304
    %692 = vmatprep.subr.mxu0 %v310
    %693 = vmatpush1.msra.mxu0 %v309
    %694 = vmatprep.subr.mxu0 %v315
    %695 = vmatpush1.msra.mxu0 %v314
    %696 = vmatprep.subr.mxu0 %v320
    %697 = vmatpush1.msra.mxu0 %v319
    %698 = vmatprep.subr.mxu0 %v325
    %699 = vmatpush1.msra.mxu0 %v324
    %700 = vmatprep.subr.mxu0 %v330
    %701 = vmatpush1.msra.mxu0 %v329
    %702 = vmatprep.subr.mxu0 %v335
    %703 = vmatpush1.msra.mxu0 %v334
    %704 = vmatprep.subr.mxu0 %v340
    %705 = vmatpush1.msra.mxu0 %v339
    %706 = vmatprep.subr.mxu0 %v345
    %707 = vmatpush1.msra.mxu0 %v344
    %708 = vmatprep.subr.mxu0 %v350
    %709 = vmatpush1.msra.mxu0 %v349
    %710 = vmatprep.subr.mxu0 %v355
    %711 = vmatpush1.msra.mxu0 %v354
    %712 = vmatprep.subr.mxu0 %v360
    %713 = vmatpush1.msra.mxu0 %v359
    %714 = vmatprep.subr.mxu0 %v365
    %715 = vmatpush1.msra.mxu0 %v364
    %716 = vmatprep.subr.mxu0 %v370
    %717 = vmatpush1.msra.mxu0 %v369
    %718 = vmatprep.subr.mxu0 %v375
    %719 = vmatpush1.msra.mxu0 %v374
    %720 = vmatprep.subr.mxu0 %v380
    %721 = vmatpush1.msra.mxu0 %v379
    %722 = vmatprep.subr.mxu0 %v385
    %723 = vmatpush1.msra.mxu0 %v384
    %724 = vmatprep.subr.mxu0 %v390
    %725 = vmatpush1.msra.mxu0 %v389
    %726 = vmatprep.subr.mxu0 %v395
    %727 = vmatpush1.msra.mxu0 %v394
    %728 = vmatprep.subr.mxu0 %v400
    %729 = vmatpush1.msra.mxu0 %v399
    %730 = vmatprep.subr.mxu0 %v405
    %731 = vmatpush1.msra.mxu0 %v404
    %732 = vmatprep.subr.mxu0 %v410
    %733 = vmatpush1.msra.mxu0 %v409
    %734 = vmatprep.subr.mxu0 %v415
    %735 = vmatpush1.msra.mxu0 %v414
    %736 = vmatprep.subr.mxu0 %v420
    %737 = vmatpush1.msra.mxu0 %v419
    %738 = vmatprep.subr.mxu0 %v425
    %739 = vmatpush1.msra.mxu0 %v424
    %740 = vmatprep.mubr.f32.mxu0 %v265
    %741 = vmatmul.mubr.f32.gmra.mrb[0].mxu0 %v264
    %v742 = vpop.f32.mrb[0].mxu0
    %v743 = vadd.f32 %v520, %v742
    %v744 = vpop.f32.mrb[0].mxu0
    %v745 = vadd.f32 %v524, %v744
    %746 = vdwg.mxu0
    %747 = vmatprep.subr.mxu0 %v430
    %748 = vmatpush1.msra.mxu0 %v429
    %749 = vmatprep.subr.mxu0 %v435
    %750 = vmatpush1.msra.mxu0 %v434
    %751 = vmatprep.subr.mxu0 %v440
    %752 = vmatpush1.msra.mxu0 %v439
    %753 = vmatprep.subr.mxu0 %v445
    %754 = vmatpush1.msra.mxu0 %v444
    %755 = vmatprep.subr.mxu0 %v450
    %756 = vmatpush1.msra.mxu0 %v449
    %757 = vmatprep.subr.mxu0 %v455
    %758 = vmatpush1.msra.mxu0 %v454
    %759 = vmatprep.subr.mxu0 %v460
    %760 = vmatpush1.msra.mxu0 %v459
    %761 = vmatprep.subr.mxu0 %v465
    %762 = vmatpush1.msra.mxu0 %v464
    %763 = vmatprep.subr.mxu0 %v470
    %764 = vmatpush1.msra.mxu0 %v469
    %765 = vmatprep.subr.mxu0 %v475
    %766 = vmatpush1.msra.mxu0 %v474
    %767 = vmatprep.subr.mxu0 %v480
    %768 = vmatpush1.msra.mxu0 %v479
    %769 = vmatprep.subr.mxu0 %v485
    %770 = vmatpush1.msra.mxu0 %v484
    %771 = vmatprep.subr.mxu0 %v490
    %772 = vmatpush1.msra.mxu0 %v489
    %773 = vmatprep.subr.mxu0 %v495
    %774 = vmatpush1.msra.mxu0 %v494
    %775 = vmatprep.subr.mxu0 %v500
    %776 = vmatpush1.msra.mxu0 %v499
    %777 = vmatprep.subr.mxu0 %v505
    %778 = vmatpush1.msra.mxu0 %v504
    %779 = vmatprep.subr.mxu0 0.0
    %780 = vmatpush1.msra.mxu0 0.0
    %781 = vmatprep.subr.mxu0 0.0
    %782 = vmatpush1.msra.mxu0 0.0
    %783 = vmatprep.subr.mxu0 0.0
    %784 = vmatpush1.msra.mxu0 0.0
    %785 = vmatprep.subr.mxu0 0.0
    %786 = vmatpush1.msra.mxu0 0.0
    %787 = vmatprep.subr.mxu0 0.0
    %788 = vmatpush1.msra.mxu0 0.0
    %789 = vmatprep.subr.mxu0 0.0
    %790 = vmatpush1.msra.mxu0 0.0
    %791 = vmatprep.subr.mxu0 0.0
    %792 = vmatpush1.msra.mxu0 0.0
    %793 = vmatprep.subr.mxu0 0.0
    %794 = vmatpush1.msra.mxu0 0.0
    %795 = vmatprep.subr.mxu0 0.0
    %796 = vmatpush1.msra.mxu0 0.0
    %797 = vmatprep.subr.mxu0 0.0
    %798 = vmatpush1.msra.mxu0 0.0
    %799 = vmatprep.subr.mxu0 0.0
    %800 = vmatpush1.msra.mxu0 0.0
    %801 = vmatprep.subr.mxu0 0.0
    %802 = vmatpush1.msra.mxu0 0.0
    %803 = vmatprep.subr.mxu0 0.0
    %804 = vmatpush1.msra.mxu0 0.0
    %805 = vmatprep.subr.mxu0 0.0
    %806 = vmatpush1.msra.mxu0 0.0
    %807 = vmatprep.subr.mxu0 0.0
    %808 = vmatpush1.msra.mxu0 0.0
    %809 = vmatprep.subr.mxu0 0.0
    %810 = vmatpush1.msra.mxu0 0.0
    %811 = vmatprep.mubr.f32.mxu0 0.0
    %812 = vmatmul.mubr.f32.gmra.mrb[0].mxu0 %v266
    %v813 = vpop.f32.mrb[0].mxu0
    %v814 = vadd.f32 %v743, %v813
    %v815 = vpop.f32.mrb[0].mxu0
    %v816 = vadd.f32 %v745, %v815
    %817 = vdwg.mxu0
    %818 = vmatprep.subr.mxu0 0.0
    %819 = vmatpush1.msra.mxu0 %v271
    %820 = vmatprep.subr.mxu0 0.0
    %821 = vmatpush1.msra.mxu0 %v276
    %822 = vmatprep.subr.mxu0 0.0
    %823 = vmatpush1.msra.mxu0 %v281
    %824 = vmatprep.subr.mxu0 0.0
    %825 = vmatpush1.msra.mxu0 %v286
    %826 = vmatprep.subr.mxu0 0.0
    %827 = vmatpush1.msra.mxu0 %v291
    %828 = vmatprep.subr.mxu0 0.0
    %829 = vmatpush1.msra.mxu0 %v296
    %830 = vmatprep.subr.mxu0 0.0
    %831 = vmatpush1.msra.mxu0 %v301
    %832 = vmatprep.subr.mxu0 0.0
    %833 = vmatpush1.msra.mxu0 %v306
    %834 = vmatprep.subr.mxu0 0.0
    %835 = vmatpush1.msra.mxu0 %v311
    %836 = vmatprep.subr.mxu0 0.0
    %837 = vmatpush1.msra.mxu0 %v316
    %838 = vmatprep.subr.mxu0 0.0
    %839 = vmatpush1.msra.mxu0 %v321
    %840 = vmatprep.subr.mxu0 0.0
    %841 = vmatpush1.msra.mxu0 %v326
    %842 = vmatprep.subr.mxu0 0.0
    %843 = vmatpush1.msra.mxu0 %v331
    %844 = vmatprep.subr.mxu0 0.0
    %845 = vmatpush1.msra.mxu0 %v336
    %846 = vmatprep.subr.mxu0 0.0
    %847 = vmatpush1.msra.mxu0 %v341
    %848 = vmatprep.subr.mxu0 0.0
    %849 = vmatpush1.msra.mxu0 %v346
    %850 = vmatprep.subr.mxu0 0.0
    %851 = vmatpush1.msra.mxu0 %v351
    %852 = vmatprep.subr.mxu0 0.0
    %853 = vmatpush1.msra.mxu0 %v356
    %854 = vmatprep.subr.mxu0 0.0
    %855 = vmatpush1.msra.mxu0 %v361
    %856 = vmatprep.subr.mxu0 0.0
    %857 = vmatpush1.msra.mxu0 %v366
    %858 = vmatprep.subr.mxu0 0.0
    %859 = vmatpush1.msra.mxu0 %v371
    %860 = vmatprep.subr.mxu0 0.0
    %861 = vmatpush1.msra.mxu0 %v376
    %862 = vmatprep.subr.mxu0 0.0
    %863 = vmatpush1.msra.mxu0 %v381
    %864 = vmatprep.subr.mxu0 0.0
    %865 = vmatpush1.msra.mxu0 %v386
    %866 = vmatprep.subr.mxu0 0.0
    %867 = vmatpush1.msra.mxu0 %v391
    %868 = vmatprep.subr.mxu0 0.0
    %869 = vmatpush1.msra.mxu0 %v396
    %870 = vmatprep.subr.mxu0 0.0
    %871 = vmatpush1.msra.mxu0 %v401
    %872 = vmatprep.subr.mxu0 0.0
    %873 = vmatpush1.msra.mxu0 %v406
    %874 = vmatprep.subr.mxu0 0.0
    %875 = vmatpush1.msra.mxu0 %v411
    %876 = vmatprep.subr.mxu0 0.0
    %877 = vmatpush1.msra.mxu0 %v416
    %878 = vmatprep.subr.mxu0 0.0
    %879 = vmatpush1.msra.mxu0 %v421
    %880 = vmatprep.subr.mxu0 0.0
    %881 = vmatpush1.msra.mxu0 %v426
    %882 = vmatprep.mubr.f32.mxu0 %v265
    %883 = vmatmul.mubr.f32.gmra.mrb[0].mxu0 %v264
    %v884 = vpop.f32.mrb[0].mxu0
    %v885 = vadd.f32 %v528, %v884
    %v886 = vpop.f32.mrb[0].mxu0
    %887 = vdwg.mxu0
    %888 = vmatprep.subr.mxu0 0.0
    %889 = vmatpush1.msra.mxu0 %v431
    %890 = vmatprep.subr.mxu0 0.0
    %891 = vmatpush1.msra.mxu0 %v436
    %892 = vmatprep.subr.mxu0 0.0
    %893 = vmatpush1.msra.mxu0 %v441
    %894 = vmatprep.subr.mxu0 0.0
    %895 = vmatpush1.msra.mxu0 %v446
    %896 = vmatprep.subr.mxu0 0.0
    %897 = vmatpush1.msra.mxu0 %v451
    %898 = vmatprep.subr.mxu0 0.0
    %899 = vmatpush1.msra.mxu0 %v456
    %900 = vmatprep.subr.mxu0 0.0
    %901 = vmatpush1.msra.mxu0 %v461
    %902 = vmatprep.subr.mxu0 0.0
    %903 = vmatpush1.msra.mxu0 %v466
    %904 = vmatprep.subr.mxu0 0.0
    %905 = vmatpush1.msra.mxu0 %v471
    %906 = vmatprep.subr.mxu0 0.0
    %907 = vmatpush1.msra.mxu0 %v476
    %908 = vmatprep.subr.mxu0 0.0
    %909 = vmatpush1.msra.mxu0 %v481
    %910 = vmatprep.subr.mxu0 0.0
    %911 = vmatpush1.msra.mxu0 %v486
    %912 = vmatprep.subr.mxu0 0.0
    %913 = vmatpush1.msra.mxu0 %v491
    %914 = vmatprep.subr.mxu0 0.0
    %915 = vmatpush1.msra.mxu0 %v496
    %916 = vmatprep.subr.mxu0 0.0
    %917 = vmatpush1.msra.mxu0 %v501
    %918 = vmatprep.subr.mxu0 0.0
    %919 = vmatpush1.msra.mxu0 %v506
    %920 = vmatprep.subr.mxu0 0.0
    %921 = vmatpush1.msra.mxu0 0.0
    %922 = vmatprep.subr.mxu0 0.0
    %923 = vmatpush1.msra.mxu0 0.0
    %924 = vmatprep.subr.mxu0 0.0
    %925 = vmatpush1.msra.mxu0 0.0
    %926 = vmatprep.subr.mxu0 0.0
    %927 = vmatpush1.msra.mxu0 0.0
    %928 = vmatprep.subr.mxu0 0.0
    %929 = vmatpush1.msra.mxu0 0.0
    %930 = vmatprep.subr.mxu0 0.0
    %931 = vmatpush1.msra.mxu0 0.0
    %932 = vmatprep.subr.mxu0 0.0
    %933 = vmatpush1.msra.mxu0 0.0
    %934 = vmatprep.subr.mxu0 0.0
    %935 = vmatpush1.msra.mxu0 0.0
    %936 = vmatprep.subr.mxu0 0.0
    %937 = vmatpush1.msra.mxu0 0.0
    %938 = vmatprep.subr.mxu0 0.0
    %939 = vmatpush1.msra.mxu0 0.0
    %940 = vmatprep.subr.mxu0 0.0
    %941 = vmatpush1.msra.mxu0 0.0
    %942 = vmatprep.subr.mxu0 0.0
    %943 = vmatpush1.msra.mxu0 0.0
    %944 = vmatprep.subr.mxu0 0.0
    %945 = vmatpush1.msra.mxu0 0.0
    %946 = vmatprep.subr.mxu0 0.0
    %947 = vmatpush1.msra.mxu0 0.0
    %948 = vmatprep.subr.mxu0 0.0
    %949 = vmatpush1.msra.mxu0 0.0
    %950 = vmatprep.subr.mxu0 0.0
    %951 = vmatpush1.msra.mxu0 0.0
    %952 = vmatprep.mubr.f32.mxu0 0.0
    %953 = vmatmul.mubr.f32.gmra.mrb[0].mxu0 %v266
    %v954 = vpop.f32.mrb[0].mxu0
    %v955 = vadd.f32 %v885, %v954
    %v956 = vpop.f32.mrb[0].mxu0
    %957 = vdwg.mxu0
    %v958 = vmax.f32 %v672, 0.0
    %v959 = vmax.f32 %v674, 0.0
    %v960 = vmax.f32 %v814, 0.0
    %v961 = vmax.f32 %v816, 0.0
    %v962 = vmax.f32 %v955, 0.0
    %v963 = vld [vmem:[%s5] sm:$0x1f]
    %v965 = vlaneseq
    %v966 = vshrl.u32 %v965, 7
    %v967 = vsub.s32 0, %v966
    %v968 = vrot.slane %v963, %v967
    %v969 = vlaneseq
    %v970 = vshrl.u32 %v969, 7
    %v971 = vsub.s32 1, %v970
    %v972 = vrot.slane %v963, %v971
    %v973 = vlaneseq
    %v974 = vshrl.u32 %v973, 7
    %v975 = vsub.s32 2, %v974
    %v976 = vrot.slane %v963, %v975
    %v977 = vlaneseq
    %v978 = vshrl.u32 %v977, 7
    %v979 = vsub.s32 3, %v978
    %v980 = vrot.slane %v963, %v979
    %v981 = vlaneseq
    %v982 = vshrl.u32 %v981, 7
    %v983 = vsub.s32 4, %v982
    %v984 = vrot.slane %v963, %v983
    %v990 = vmul.f32 %v958, %v968
    %v991 = vmul.f32 %v959, %v972
    %v992 = vmul.f32 %v960, %v976
    %v993 = vmul.f32 %v961, %v980
    %v994 = vmul.f32 %v962, %v984
    %v995 = vadd.f32 %v990, %v991
    %v996 = vadd.f32 %v995, %v992
    %v997 = vadd.f32 %v996, %v993
    %v998 = vadd.f32 %v997, %v994
    %999 = vadd.xlane.f32.xlu0 %v998
    %v1000 = vpop.xlane.xlu0 %999
    %v1001 = vld [vmem:[#allocation2] sm:$0x1]
    %v1003 = vlaneseq
    %v1004 = vshrl.u32 %v1003, 7
    %v1005 = vsub.s32 0, %v1004
    %v1006 = vrot.slane %v1001, %v1005
    %v1008 = vadd.f32 %v1000, %v1006
    %vm1009 = vcmask 7168
    %1010 = vst.msk [vmem:[%s7] sm:$0xff] %vm1009, %v1008
    // Predicated region
    $region46: #{critic_forward.1} parent=1 // pred_check
      _
    $region47: #{critic_forward.1} parent=1 // pred_check_branch
      %1012 = sbr.rel (0) target = $region49
    $region48: #{critic_forward.1} parent=1 // pred_region
      _
    $region49: #{critic_forward.1} parent=1 // pred_fallthru
      _
    // Predicated region
    $region50: #{critic_forward.1} parent=1 // pred_check
      _
    $region51: #{critic_forward.1} parent=1 // pred_check_branch
      %1014 = sbr.rel (0) target = $region53
    $region52: #{critic_forward.1} parent=1 // pred_region
      _
    $region53: #{critic_forward.1} parent=1 // pred_fallthru
      _
    %1015 = vsyncpa [#allocation4], 1
    %1016 = vsyncpa [#allocation6], 1
    %1017 = vsyncpa [#allocation9], 1

</llo_original>
